<compile_context>
chip_gen: v5e
topology: v5e:2x2
jax: 0.10.0
libtpu: 0.0.40
codegen_flags: <defaults>
</compile_context>

<pallas_src>
from functools import partial

import jax
import jax.numpy as jnp
from jax.experimental import pallas as pl
from jax.experimental.pallas import tpu as pltpu


def _round_up(x: int, m: int) -> int:
    return (x + m - 1) // m * m


def _pick_tiling(batch: int, tile_b: int):
    """Choose (tile_b, padded_batch). Keeps tiles sublane-aligned (multiple of 8),
    bounds padding waste for awkward batch sizes, and keeps >= 2 grid steps when
    possible so the "parallel" batch axis can be split across v7x's two TCs."""
    b8 = _round_up(max(batch, 1), 8)
    tb = min(_round_up(tile_b, 8), b8)
    # Shrink the tile if rounding the batch up to it wastes more than half a tile.
    while tb > 8 and _round_up(b8, tb) - b8 > tb // 2:
        tb = _round_up(tb // 2, 8)
    # Megacore: guarantee >= 2 grid steps when the batch allows it.
    if _round_up(b8, tb) // tb < 2 and tb > 8:
        tb = _round_up(tb // 2, 8)
    return tb, _round_up(b8, tb)


def _mlp_kernel(x_ref, w1_ref, b1_ref, w2_ref, b2_ref, w3_ref, b3_ref,
                o_ref, h1_scr, h2_scr):
    # Layer 1: merged (kp ++ action) @ W1, f32 accumulation, bias+ReLU in f32,
    # staged to VMEM as bf16.
    h1 = jnp.dot(x_ref[...], w1_ref[...], preferred_element_type=jnp.float32)
    h1_scr[...] = jnp.maximum(h1 + b1_ref[...], 0.0).astype(jnp.bfloat16)

    # Layer 2: Linear(256 -> 256) + ReLU, bf16 staging.
    h2 = jnp.dot(h1_scr[...], w2_ref[...], preferred_element_type=jnp.float32)
    h2_scr[...] = jnp.maximum(h2 + b2_ref[...], 0.0).astype(jnp.bfloat16)

    # Layer 3: Linear(256 -> D_out padded to 128 lanes); lane-dense bf16 store.
    out = jnp.dot(h2_scr[...], w3_ref[...], preferred_element_type=jnp.float32)
    o_ref[...] = (out + b3_ref[...]).astype(o_ref.dtype)


def prepare_params(params, *, weight_dtype=jnp.bfloat16):
    """One-time weight prep (do NOT call per step): bf16 casts + zero padding.
    Weights are stored transposed vs torch ((in, out)); torch weights must be
    transposed (out,in)->(in,out) before calling this."""
    w1, b1, w2, b2, w3, b3 = params
    d_in, hidden = w1.shape
    d_out = w3.shape[1]
    d_in_p = _round_up(d_in, 32)        # dense bf16 sublane packing for W1 rows
    d_out_p = _round_up(d_out, 128)     # lane-dense output slab

    w1_p = jnp.zeros((d_in_p, hidden), weight_dtype).at[:d_in, :].set(
        w1.astype(weight_dtype))
    w2_b = w2.astype(weight_dtype)
    w3_p = jnp.zeros((hidden, d_out_p), weight_dtype).at[:, :d_out].set(
        w3.astype(weight_dtype))
    b1_r = jnp.asarray(b1, jnp.float32).reshape(1, hidden)
    b2_r = jnp.asarray(b2, jnp.float32).reshape(1, hidden)
    b3_p = jnp.zeros((1, d_out_p), jnp.float32).at[:, :d_out].set(
        jnp.asarray(b3, jnp.float32).reshape(1, d_out))
    return (w1_p, b1_r, w2_b, b2_r, w3_p, b3_p)


@partial(jax.jit, static_argnames=("tile_b",))
def dynamics_model_forward(keypoints, action, prepared_params, *, tile_b: int = 512):
    """keypoints: (B, NK*2) f32, action: (B, A) f32 -> (B, NK*2) f32."""
    w1_p, b1, w2_b, b2, w3_p, b3_p = prepared_params
    B, nk2 = keypoints.shape
    a_dim = action.shape[1]
    d_in = nk2 + a_dim
    d_in_p, hidden = w1_p.shape
    d_out_p = w3_p.shape[1]
    d_out = nk2                                    # next keypoints, same width
    assert d_in <= d_in_p and d_out <= d_out_p

    tb, b_pad = _pick_tiling(B, tile_b)
    grid = (b_pad // tb,)

    # Fused concat + pad + bf16 cast (tiny wrapper op; fuses under jit).
    x = jnp.concatenate([keypoints, action], axis=-1).astype(jnp.bfloat16)
    x = jnp.pad(x, ((0, b_pad - B), (0, d_in_p - d_in)))

    def const_spec(shape):
        return pl.BlockSpec(shape, lambda i: (0, 0))   # VMEM-resident weights

    flops = 2 * b_pad * (d_in_p * hidden + hidden * hidden + hidden * d_out_p)
    bytes_accessed = (
        x.size * 2 + b_pad * d_out_p * 2                       # bf16 activations
        + (w1_p.size + w2_b.size + w3_p.size) * 2              # bf16 weights
        + (b1.size + b2.size + b3_p.size) * 4)                 # f32 biases

    out = pl.pallas_call(
        _mlp_kernel,
        out_shape=jax.ShapeDtypeStruct((b_pad, d_out_p), jnp.bfloat16),
        grid_spec=pltpu.PrefetchScalarGridSpec(
            num_scalar_prefetch=0,
            grid=grid,
            in_specs=[
                pl.BlockSpec((tb, d_in_p), lambda i: (i, 0)),   # fused kp+action
                const_spec((d_in_p, hidden)),                   # W1 (K padded)
                const_spec((1, hidden)),                        # b1
                const_spec((hidden, hidden)),                   # W2
                const_spec((1, hidden)),                        # b2
                const_spec((hidden, d_out_p)),                  # W3 (lane padded)
                const_spec((1, d_out_p)),                       # b3 (lane padded)
            ],
            out_specs=pl.BlockSpec((tb, d_out_p), lambda i: (i, 0)),
            scratch_shapes=[pltpu.VMEM((tb, hidden), jnp.bfloat16),  # h1 (bf16)
                            pltpu.VMEM((tb, hidden), jnp.bfloat16)], # h2 (bf16)
        ),
        compiler_params=pltpu.CompilerParams(
            dimension_semantics=("parallel",)),     # megacore split on v7x
        cost_estimate=pl.CostEstimate(
            flops=flops, transcendentals=0, bytes_accessed=bytes_accessed),
    )(x, w1_p, b1, w2_b, b2, w3_p, b3_p)

    # Slice away batch/lane padding; return f32 like the PyTorch module.
    return out[:B, :d_out].astype(jnp.float32)


def init_params(key, num_keypoints, action_dim, hidden=256):
    """torch.nn.Linear-style init (U[-1/sqrt(fan_in), 1/sqrt(fan_in)]).
    Weights stored transposed vs torch: (in_features, out_features); biases (1, out)."""
    d_in = num_keypoints * 2 + action_dim
    d_out = num_keypoints * 2
    dims = [(d_in, hidden), (hidden, hidden), (hidden, d_out)]
    params = []
    for fan_in, fan_out in dims:
        key, kw, kb = jax.random.split(key, 3)
        bound = 1.0 / jnp.sqrt(fan_in)
        w = jax.random.uniform(kw, (fan_in, fan_out), jnp.float32, -bound, bound)
        b = jax.random.uniform(kb, (1, fan_out), jnp.float32, -bound, bound)
        params.extend([w, b])
    return tuple(params)


def reference_forward(keypoints, action, params):
    """Same-precision JAX reference (bf16 weights/activations, f32 accumulation)."""
    w1, b1, w2, b2, w3, b3 = params
    w1b, w2b, w3b = (w.astype(jnp.bfloat16) for w in (w1, w2, w3))
    x = jnp.concatenate([keypoints, action], axis=-1).astype(jnp.bfloat16)
    h1 = jnp.maximum(jnp.dot(x, w1b, preferred_element_type=jnp.float32) + b1, 0.0)
    h2 = jnp.maximum(jnp.dot(h1.astype(jnp.bfloat16), w2b,
                             preferred_element_type=jnp.float32) + b2, 0.0)
    return jnp.dot(h2.astype(jnp.bfloat16), w3b,
                   preferred_element_type=jnp.float32) + b3


if __name__ == "__main__":
    NUM_KEYPOINTS = 8
    ACTION_DIM = 4

    key = jax.random.PRNGKey(0)
    k_kp, k_act, k_param, k_kp2, k_act2 = jax.random.split(key, 5)

    params = init_params(k_param, NUM_KEYPOINTS, ACTION_DIM)
    prepared = prepare_params(params)          # one-time weight prep

    # Small batch (B=2): single grid step.
    B = 2
    keypoints = jax.random.normal(k_kp, (B, NUM_KEYPOINTS * 2), jnp.float32)
    action = jax.random.normal(k_act, (B, ACTION_DIM), jnp.float32)
    out = jax.block_until_ready(dynamics_model_forward(keypoints, action, prepared))
    ref = reference_forward(keypoints, action, params)
    assert out.shape == (B, NUM_KEYPOINTS * 2), out.shape
    assert jnp.allclose(out, ref, atol=2e-2, rtol=2e-2), "mismatch vs reference (B=2)"

    # Slightly larger batch: exercises the multi-tile pipelined path, batch
    # padding, and the megacore-parallel grid (>= 2 steps) flagged in review.
    B2 = 45
    keypoints2 = jax.random.normal(k_kp2, (B2, NUM_KEYPOINTS * 2), jnp.float32)
    action2 = jax.random.normal(k_act2, (B2, ACTION_DIM), jnp.float32)
    out2 = jax.block_until_ready(dynamics_model_forward(keypoints2, action2, prepared))
    ref2 = reference_forward(keypoints2, action2, params)
    assert out2.shape == (B2, NUM_KEYPOINTS * 2), out2.shape
    assert jnp.allclose(out2, ref2, atol=2e-2, rtol=2e-2), "mismatch vs reference (B=45)"

    print("KERNEL_OK")
</pallas_src>

<mosaic_0001>
module attributes {stable_mosaic.version = 11 : i64} {
  func.func @_mlp_kernel(%arg0: i32, %arg1: memref<8x32xbf16, #tpu.memory_space<vmem>>, %arg2: memref<32x256xbf16, #tpu.memory_space<vmem>>, %arg3: memref<1x256xf32, #tpu.memory_space<vmem>>, %arg4: memref<256x256xbf16, #tpu.memory_space<vmem>>, %arg5: memref<1x256xf32, #tpu.memory_space<vmem>>, %arg6: memref<256x128xbf16, #tpu.memory_space<vmem>>, %arg7: memref<1x128xf32, #tpu.memory_space<vmem>>, %arg8: memref<8x128xbf16, #tpu.memory_space<vmem>>, %arg9: memref<8x256xbf16, #tpu.memory_space<vmem>>, %arg10: memref<8x256xbf16, #tpu.memory_space<vmem>>) attributes {dimension_semantics = [#tpu.dimension_semantics<parallel>], iteration_bounds = array<i64: 1>, scalar_prefetch = 0 : i64, scratch_operands = 2 : i64, tpu.core_type = #tpu.core_type<tc>, window_params = [{transform_indices = @transform_0, window_bounds = array<i64: 8, 32>}, {pipeline_mode = #tpu.pipeline_mode<synchronous>, transform_indices = @transform_1, window_bounds = array<i64: 32, 256>}, {pipeline_mode = #tpu.pipeline_mode<synchronous>, transform_indices = @transform_2, window_bounds = array<i64: 1, 256>}, {pipeline_mode = #tpu.pipeline_mode<synchronous>, transform_indices = @transform_3, window_bounds = array<i64: 256, 256>}, {pipeline_mode = #tpu.pipeline_mode<synchronous>, transform_indices = @transform_4, window_bounds = array<i64: 1, 256>}, {pipeline_mode = #tpu.pipeline_mode<synchronous>, transform_indices = @transform_5, window_bounds = array<i64: 256, 128>}, {pipeline_mode = #tpu.pipeline_mode<synchronous>, transform_indices = @transform_6, window_bounds = array<i64: 1, 128>}, {transform_indices = @transform_7, window_bounds = array<i64: 8, 128>}]} {
    %c0 = arith.constant 0 : index
    %c0_0 = arith.constant 0 : index
    %0 = vector.load %arg1[%c0, %c0_0] : memref<8x32xbf16, #tpu.memory_space<vmem>>, vector<8x32xbf16>
    %c0_1 = arith.constant 0 : index
    %c0_2 = arith.constant 0 : index
    %1 = vector.load %arg2[%c0_1, %c0_2] : memref<32x256xbf16, #tpu.memory_space<vmem>>, vector<32x256xbf16>
    %cst = arith.constant dense<0.000000e+00> : vector<8x256xf32>
    %2 = tpu.matmul %0, %1, %cst {dimension_numbers = #tpu.dot_dimension_numbers<[1], [0], [0], [1], [0, 0, 1, 1], [], []>} : vector<8x32xbf16>, vector<32x256xbf16>, vector<8x256xf32> -> vector<8x256xf32>
    %c0_3 = arith.constant 0 : index
    %c0_4 = arith.constant 0 : index
    %3 = vector.load %arg3[%c0_3, %c0_4] : memref<1x256xf32, #tpu.memory_space<vmem>>, vector<1x256xf32>
    %4 = vector.broadcast %3 : vector<1x256xf32> to vector<8x256xf32>
    %5 = arith.addf %2, %4 : vector<8x256xf32>
    %cst_5 = arith.constant 0.000000e+00 : f32
    %6 = vector.broadcast %cst_5 : f32 to vector<8x256xf32>
    %7 = arith.maximumf %5, %6 : vector<8x256xf32>
    %8 = arith.truncf %7 : vector<8x256xf32> to vector<8x256xbf16>
    %c0_6 = arith.constant 0 : index
    %c0_7 = arith.constant 0 : index
    %9 = vector.load %arg9[%c0_6, %c0_7] : memref<8x256xbf16, #tpu.memory_space<vmem>>, vector<8x256xbf16>
    tpu.vector_store %arg9[%c0_6, %c0_7], %8 {strides = array<i32>} : memref<8x256xbf16, #tpu.memory_space<vmem>>, vector<8x256xbf16>,
    %c0_8 = arith.constant 0 : index
    %c0_9 = arith.constant 0 : index
    %10 = vector.load %arg9[%c0_8, %c0_9] : memref<8x256xbf16, #tpu.memory_space<vmem>>, vector<8x256xbf16>
    %c0_10 = arith.constant 0 : index
    %c0_11 = arith.constant 0 : index
    %11 = vector.load %arg4[%c0_10, %c0_11] : memref<256x256xbf16, #tpu.memory_space<vmem>>, vector<256x256xbf16>
    %cst_12 = arith.constant dense<0.000000e+00> : vector<8x256xf32>
    %12 = tpu.matmul %10, %11, %cst_12 {dimension_numbers = #tpu.dot_dimension_numbers<[1], [0], [0], [1], [0, 0, 1, 1], [], []>} : vector<8x256xbf16>, vector<256x256xbf16>, vector<8x256xf32> -> vector<8x256xf32>
    %c0_13 = arith.constant 0 : index
    %c0_14 = arith.constant 0 : index
    %13 = vector.load %arg5[%c0_13, %c0_14] : memref<1x256xf32, #tpu.memory_space<vmem>>, vector<1x256xf32>
    %14 = vector.broadcast %13 : vector<1x256xf32> to vector<8x256xf32>
    %15 = arith.addf %12, %14 : vector<8x256xf32>
    %cst_15 = arith.constant 0.000000e+00 : f32
    %16 = vector.broadcast %cst_15 : f32 to vector<8x256xf32>
    %17 = arith.maximumf %15, %16 : vector<8x256xf32>
    %18 = arith.truncf %17 : vector<8x256xf32> to vector<8x256xbf16>
    %c0_16 = arith.constant 0 : index
    %c0_17 = arith.constant 0 : index
    %19 = vector.load %arg10[%c0_16, %c0_17] : memref<8x256xbf16, #tpu.memory_space<vmem>>, vector<8x256xbf16>
    tpu.vector_store %arg10[%c0_16, %c0_17], %18 {strides = array<i32>} : memref<8x256xbf16, #tpu.memory_space<vmem>>, vector<8x256xbf16>,
    %c0_18 = arith.constant 0 : index
    %c0_19 = arith.constant 0 : index
    %20 = vector.load %arg10[%c0_18, %c0_19] : memref<8x256xbf16, #tpu.memory_space<vmem>>, vector<8x256xbf16>
    %c0_20 = arith.constant 0 : index
    %c0_21 = arith.constant 0 : index
    %21 = vector.load %arg6[%c0_20, %c0_21] : memref<256x128xbf16, #tpu.memory_space<vmem>>, vector<256x128xbf16>
    %cst_22 = arith.constant dense<0.000000e+00> : vector<8x128xf32>
    %22 = tpu.matmul %20, %21, %cst_22 {dimension_numbers = #tpu.dot_dimension_numbers<[1], [0], [0], [1], [0, 0, 1, 1], [], []>} : vector<8x256xbf16>, vector<256x128xbf16>, vector<8x128xf32> -> vector<8x128xf32>
    %c0_23 = arith.constant 0 : index
    %c0_24 = arith.constant 0 : index
    %23 = vector.load %arg7[%c0_23, %c0_24] : memref<1x128xf32, #tpu.memory_space<vmem>>, vector<1x128xf32>
    %24 = vector.broadcast %23 : vector<1x128xf32> to vector<8x128xf32>
    %25 = arith.addf %22, %24 : vector<8x128xf32>
    %26 = arith.truncf %25 : vector<8x128xf32> to vector<8x128xbf16>
    %c0_25 = arith.constant 0 : index
    %c0_26 = arith.constant 0 : index
    %27 = vector.load %arg8[%c0_25, %c0_26] : memref<8x128xbf16, #tpu.memory_space<vmem>>, vector<8x128xbf16>
    tpu.vector_store %arg8[%c0_25, %c0_26], %26 {strides = array<i32>} : memref<8x128xbf16, #tpu.memory_space<vmem>>, vector<8x128xbf16>,
    return
  }
  func.func @transform_0(%arg0: i32) -> (i32, i32) {
    %c0_i32 = arith.constant 0 : i32
    %c0_i32_0 = arith.constant 0 : i32
    return %arg0, %c0_i32 : i32, i32
  }
  func.func @transform_1(%arg0: i32) -> (i32, i32) {
    %c0_i32 = arith.constant 0 : i32
    %c0_i32_0 = arith.constant 0 : i32
    %c0_i32_1 = arith.constant 0 : i32
    return %c0_i32, %c0_i32_0 : i32, i32
  }
  func.func @transform_2(%arg0: i32) -> (i32, i32) {
    %c0_i32 = arith.constant 0 : i32
    %c0_i32_0 = arith.constant 0 : i32
    %c0_i32_1 = arith.constant 0 : i32
    return %c0_i32, %c0_i32_0 : i32, i32
  }
  func.func @transform_3(%arg0: i32) -> (i32, i32) {
    %c0_i32 = arith.constant 0 : i32
    %c0_i32_0 = arith.constant 0 : i32
    %c0_i32_1 = arith.constant 0 : i32
    return %c0_i32, %c0_i32_0 : i32, i32
  }
  func.func @transform_4(%arg0: i32) -> (i32, i32) {
    %c0_i32 = arith.constant 0 : i32
    %c0_i32_0 = arith.constant 0 : i32
    %c0_i32_1 = arith.constant 0 : i32
    return %c0_i32, %c0_i32_0 : i32, i32
  }
  func.func @transform_5(%arg0: i32) -> (i32, i32) {
    %c0_i32 = arith.constant 0 : i32
    %c0_i32_0 = arith.constant 0 : i32
    %c0_i32_1 = arith.constant 0 : i32
    return %c0_i32, %c0_i32_0 : i32, i32
  }
  func.func @transform_6(%arg0: i32) -> (i32, i32) {
    %c0_i32 = arith.constant 0 : i32
    %c0_i32_0 = arith.constant 0 : i32
    %c0_i32_1 = arith.constant 0 : i32
    return %c0_i32, %c0_i32_0 : i32, i32
  }
  func.func @transform_7(%arg0: i32) -> (i32, i32) {
    %c0_i32 = arith.constant 0 : i32
    %c0_i32_0 = arith.constant 0 : i32
    return %arg0, %c0_i32 : i32, i32
  }
}

</mosaic_0001>

<llo_original>
// kernel: dynamics_model_forward.1
$region0: #{dynamics_model_forward.1}
  #allocation0 [shape = 'u32[]', space=smem, size = 0x4, offset = 0x4, fixed_abs, tag = 'smem constant byte address 0x4 - core index']
  #allocation1 [shape = 'u32[72,128]{1,0:T(1,128)}', space=vmem, size = 0x9000, scoped, tag = 'internal scratch']
  #allocation2 [shape = 'bf16[8,256]{1,0:T(8,128)(2,1)}', space=vmem, size = 0x1000, scoped, tag = 'scratch operand']
  #allocation3 [shape = 'bf16[8,256]{1,0:T(8,128)(2,1)}', space=vmem, size = 0x1000, scoped, tag = 'scratch operand']
  %s0 = inlined_call_operand.vmem [shape: bf16[8,32], index: 0, kind: input, shape index: {}]
  %s1 = inlined_call_operand.hbm [shape: bf16[32,256], index: 1, kind: input, shape index: {}]
  %s2 = inlined_call_operand.vmem [shape: f32[1,256], index: 2, kind: input, shape index: {}]
  %s3 = inlined_call_operand.hbm [shape: bf16[256,256], index: 3, kind: input, shape index: {}]
  %s4 = inlined_call_operand.vmem [shape: f32[1,256], index: 4, kind: input, shape index: {}]
  %s5 = inlined_call_operand.hbm [shape: bf16[256,128], index: 5, kind: input, shape index: {}]
  %s6 = inlined_call_operand.vmem [shape: f32[1,128], index: 6, kind: input, shape index: {}]
  %s7 = inlined_call_operand.vmem [shape: bf16[8,128], index: 7, kind: output, shape index: {}]
  %s8 = sld [smem:[#allocation0]]
  $region50: #{dynamics_model_forward.1} parent=0
    _
  %s10 = ssub.s32 1, %s8
  %s11 = scalar_select 0, %s10, %s8
  $region1: #{dynamics_model_forward.1} parent=0
    #allocation4 [shape = 'u8[16384]{0}', space=vmem, size = 0x4000, scoped, tag = 'input window, operand 1, single buffered']
    #allocation5 [shape = 's32[1]{0}', space=sflag, size = 0x4, scoped, tag = 'scoped memory for dynamics_model_forward.1']
    #allocation6 [shape = 'u8[131072]{0}', space=vmem, size = 0x20000, scoped, tag = 'input window, operand 3, single buffered']
    #allocation7 [shape = 's32[1]{0}', space=sflag, size = 0x4, scoped, tag = 'scoped memory for dynamics_model_forward.1']
    #allocation8 [shape = 'u8[65536]{0}', space=vmem, size = 0x10000, scoped, tag = 'input window, operand 5, single buffered']
    %12 = vsyncpa [#allocation5], 0
    %13 = vsyncpa [#allocation7], 0
    // Predicated region
    $region2: #{dynamics_model_forward.1} parent=1 // pred_check
      _
    $region3: #{dynamics_model_forward.1} parent=1 // pred_check_branch
      %15 = sbr.rel (0) target = $region5
    $region4: #{dynamics_model_forward.1} parent=1 // pred_region
      _
    $region5: #{dynamics_model_forward.1} parent=1 // pred_fallthru
      _
    // Predicated region
    $region6: #{dynamics_model_forward.1} parent=1 // pred_check
      _
    $region7: #{dynamics_model_forward.1} parent=1 // pred_check_branch
      %17 = sbr.rel (0) target = $region9
    $region8: #{dynamics_model_forward.1} parent=1 // pred_region
      %19 = vsyncadd [#allocation5], 0
      %s20 = sshll.u32 %s1, 4
      %s21 = int_to_ptr.hbm [resolvable:$true] %s20
      %s22 = sshll.u32 [#allocation4], 4
      %s23 = int_to_ptr.vmem [resolvable:$true] %s22
      %28 = dma.hbm_to_vmem [thread:$0]  %s21, 512, %s23, [#allocation5], 128, 128, 8
    $region9: #{dynamics_model_forward.1} parent=1 // pred_fallthru
      _
    // Predicated region
    $region10: #{dynamics_model_forward.1} parent=1 // pred_check
      _
    $region11: #{dynamics_model_forward.1} parent=1 // pred_check_branch
      %30 = sbr.rel (0) target = $region13
    $region12: #{dynamics_model_forward.1} parent=1 // pred_region
      _
    $region13: #{dynamics_model_forward.1} parent=1 // pred_fallthru
      _
    // Predicated region
    $region14: #{dynamics_model_forward.1} parent=1 // pred_check
      _
    $region15: #{dynamics_model_forward.1} parent=1 // pred_check_branch
      %32 = sbr.rel (0) target = $region17
    $region16: #{dynamics_model_forward.1} parent=1 // pred_region
      %34 = vsyncadd [#allocation7], 0
      %s35 = sshll.u32 %s3, 4
      %s36 = int_to_ptr.hbm [resolvable:$true] %s35
      %s37 = sshll.u32 [#allocation6], 4
      %s38 = int_to_ptr.vmem [resolvable:$true] %s37
      %43 = dma.hbm_to_vmem [thread:$0]  %s36, 4096, %s38, [#allocation7], 128, 128, 8
    $region17: #{dynamics_model_forward.1} parent=1 // pred_fallthru
      _
    // Predicated region
    $region18: #{dynamics_model_forward.1} parent=1 // pred_check
      _
    $region19: #{dynamics_model_forward.1} parent=1 // pred_check_branch
      %45 = sbr.rel (0) target = $region21
    $region20: #{dynamics_model_forward.1} parent=1 // pred_region
      _
    $region21: #{dynamics_model_forward.1} parent=1 // pred_fallthru
      _
    // Predicated region
    $region22: #{dynamics_model_forward.1} parent=1 // pred_check
      _
    $region23: #{dynamics_model_forward.1} parent=1 // pred_check_branch
      %47 = sbr.rel (0) target = $region25
    $region24: #{dynamics_model_forward.1} parent=1 // pred_region
      %49 = vsyncadd [#allocation7], 0
      %s50 = sshll.u32 %s5, 4
      %s51 = int_to_ptr.hbm [resolvable:$true] %s50
      %s52 = sshll.u32 [#allocation8], 4
      %s53 = int_to_ptr.vmem [resolvable:$true] %s52
      %58 = dma.hbm_to_vmem [thread:$0]  %s51, 2048, %s53, [#allocation7], 64, 64, 4
    $region25: #{dynamics_model_forward.1} parent=1 // pred_fallthru
      _
    // Predicated region
    $region26: #{dynamics_model_forward.1} parent=1 // pred_check
      _
    $region27: #{dynamics_model_forward.1} parent=1 // pred_check_branch
      %60 = sbr.rel (0) target = $region29
    $region28: #{dynamics_model_forward.1} parent=1 // pred_region
      _
    $region29: #{dynamics_model_forward.1} parent=1 // pred_fallthru
      _
    // Predicated region
    $region30: #{dynamics_model_forward.1} parent=1 // pred_check
      _
    $region31: #{dynamics_model_forward.1} parent=1 // pred_check_branch
      %62 = sbr.rel (0) target = $region33
    $region32: #{dynamics_model_forward.1} parent=1 // pred_region
      %64 = dma.done [#allocation5], 512
    $region33: #{dynamics_model_forward.1} parent=1 // pred_fallthru
      _
    // Predicated region
    $region34: #{dynamics_model_forward.1} parent=1 // pred_check
      _
    $region35: #{dynamics_model_forward.1} parent=1 // pred_check_branch
      %66 = sbr.rel (0) target = $region37
    $region36: #{dynamics_model_forward.1} parent=1 // pred_region
      %68 = dma.done [#allocation7], 4096
    $region37: #{dynamics_model_forward.1} parent=1 // pred_fallthru
      _
    // Predicated region
    $region38: #{dynamics_model_forward.1} parent=1 // pred_check
      _
    $region39: #{dynamics_model_forward.1} parent=1 // pred_check_branch
      %70 = sbr.rel (0) target = $region41
    $region40: #{dynamics_model_forward.1} parent=1 // pred_region
      %72 = dma.done [#allocation7], 2048
    $region41: #{dynamics_model_forward.1} parent=1 // pred_fallthru
      _
    %v74 = vld [vmem:[%s0] sm:$0xf]
    %v75 = vld [vmem:[#allocation4] sm:$0xff]
    %v76 = vld [vmem:[#allocation4 + $0x8] sm:$0xff]
    %v77 = vld [vmem:[#allocation4 + $0x10] sm:$0xff]
    %v78 = vld [vmem:[#allocation4 + $0x18] sm:$0xff]
    %v79 = vld [vmem:[%s2] sm:$0x3]
    %v81 = vperm.slane %v79, 0
    %v82 = vperm.slane %v79, 1
    %v89 = vunpack.c.l.b16 %v75
    %v90 = vunpack.c.h.b16 %v75
    %v91 = vunpack.c.l.b16 %v76
    %v92 = vunpack.c.h.b16 %v76
    %v93 = vunpack.c.l.b16 %v77
    %v94 = vunpack.c.h.b16 %v77
    %v95 = vunpack.c.l.b16 %v78
    %v96 = vunpack.c.h.b16 %v78
    %v97 = vpack.c.b16 %v91, %v89
    %v98 = vpack.c.b16 %v92, %v90
    %v99 = vpack.c.b16 %v95, %v93
    %v100 = vpack.c.b16 %v96, %v94
    %vm105 = vcmask 261120
    %v107 = vsel %vm105, %v74, 0
    %109 = vmatpush.bf16.msra.mxu0 0
    %110 = vmatpush.bf16.msra.mxu0 0
    %111 = vmatpush.bf16.msra.mxu0 0
    %112 = vmatpush.bf16.msra.mxu0 0
    %113 = vmatpush.bf16.msra.mxu0 0
    %114 = vmatpush.bf16.msra.mxu0 0
    %115 = vmatpush.bf16.msra.mxu0 %v99
    %116 = vmatpush.bf16.msra.mxu0 %v97
    %117 = vmatmul.bf16.gmra.mxu0 %v107
    %v118 = vpop.f32.mrf.mxu0
    %v119 = vadd.f32 %v81, %v118
    %v120 = vpop.f32.mrf.mxu0
    %121 = vdwg.mxu0
    %122 = vmatpush.bf16.msra.mxu0 0
    %123 = vmatpush.bf16.msra.mxu0 0
    %124 = vmatpush.bf16.msra.mxu0 0
    %125 = vmatpush.bf16.msra.mxu0 0
    %126 = vmatpush.bf16.msra.mxu0 0
    %127 = vmatpush.bf16.msra.mxu0 0
    %128 = vmatpush.bf16.msra.mxu0 %v100
    %129 = vmatpush.bf16.msra.mxu0 %v98
    %130 = vmatmul.bf16.gmra.mxu0 %v107
    %v131 = vpop.f32.mrf.mxu0
    %v132 = vadd.f32 %v82, %v131
    %v133 = vpop.f32.mrf.mxu0
    %134 = vdwg.mxu0
    %v135 = vmax.f32 %v119, 0.0
    %v136 = vmax.f32 %v132, 0.0
    %v137 = vpack.c.bf16 %v136, %v135
    %138 = vst [vmem:[#allocation2] sm:$0xff] %v137
    %v139 = vld [vmem:[#allocation2] sm:$0xff]
    %v140 = vld [vmem:[#allocation6] sm:$0xff]
    %v141 = vld [vmem:[#allocation6 + $0x8] sm:$0xff]
    %v142 = vld [vmem:[#allocation6 + $0x10] sm:$0xff]
    %v143 = vld [vmem:[#allocation6 + $0x18] sm:$0xff]
    %v144 = vld [vmem:[#allocation6 + $0x20] sm:$0xff]
    %v145 = vld [vmem:[#allocation6 + $0x28] sm:$0xff]
    %v146 = vld [vmem:[#allocation6 + $0x30] sm:$0xff]
    %v147 = vld [vmem:[#allocation6 + $0x38] sm:$0xff]
    %v148 = vld [vmem:[#allocation6 + $0x40] sm:$0xff]
    %v149 = vld [vmem:[#allocation6 + $0x48] sm:$0xff]
    %v150 = vld [vmem:[#allocation6 + $0x50] sm:$0xff]
    %v151 = vld [vmem:[#allocation6 + $0x58] sm:$0xff]
    %v152 = vld [vmem:[#allocation6 + $0x60] sm:$0xff]
    %v153 = vld [vmem:[#allocation6 + $0x68] sm:$0xff]
    %v154 = vld [vmem:[#allocation6 + $0x70] sm:$0xff]
    %v155 = vld [vmem:[#allocation6 + $0x78] sm:$0xff]
    %v156 = vld [vmem:[#allocation6 + $0x80] sm:$0xff]
    %v157 = vld [vmem:[#allocation6 + $0x88] sm:$0xff]
    %v158 = vld [vmem:[#allocation6 + $0x90] sm:$0xff]
    %v159 = vld [vmem:[#allocation6 + $0x98] sm:$0xff]
    %v160 = vld [vmem:[#allocation6 + $0xa0] sm:$0xff]
    %v161 = vld [vmem:[#allocation6 + $0xa8] sm:$0xff]
    %v162 = vld [vmem:[#allocation6 + $0xb0] sm:$0xff]
    %v163 = vld [vmem:[#allocation6 + $0xb8] sm:$0xff]
    %v164 = vld [vmem:[#allocation6 + $0xc0] sm:$0xff]
    %v165 = vld [vmem:[#allocation6 + $0xc8] sm:$0xff]
    %v166 = vld [vmem:[#allocation6 + $0xd0] sm:$0xff]
    %v167 = vld [vmem:[#allocation6 + $0xd8] sm:$0xff]
    %v168 = vld [vmem:[#allocation6 + $0xe0] sm:$0xff]
    %v169 = vld [vmem:[#allocation6 + $0xe8] sm:$0xff]
    %v170 = vld [vmem:[#allocation6 + $0xf0] sm:$0xff]
    %v171 = vld [vmem:[#allocation6 + $0xf8] sm:$0xff]
    %v172 = vld [vmem:[%s4] sm:$0x3]
    %v174 = vperm.slane %v172, 0
    %v175 = vperm.slane %v172, 1
    %v179 = vunpack.c.l.b16 %v139
    %v180 = vunpack.c.h.b16 %v139
    %v181 = vpack.c.b16 %v179, %v179
    %v182 = vpack.c.b16 %v180, %v180
    %v217 = vunpack.c.l.b16 %v140
    %v218 = vunpack.c.h.b16 %v140
    %v219 = vunpack.c.l.b16 %v141
    %v220 = vunpack.c.h.b16 %v141
    %v221 = vunpack.c.l.b16 %v142
    %v222 = vunpack.c.h.b16 %v142
    %v223 = vunpack.c.l.b16 %v143
    %v224 = vunpack.c.h.b16 %v143
    %v225 = vunpack.c.l.b16 %v144
    %v226 = vunpack.c.h.b16 %v144
    %v227 = vunpack.c.l.b16 %v145
    %v228 = vunpack.c.h.b16 %v145
    %v229 = vunpack.c.l.b16 %v146
    %v230 = vunpack.c.h.b16 %v146
    %v231 = vunpack.c.l.b16 %v147
    %v232 = vunpack.c.h.b16 %v147
    %v233 = vunpack.c.l.b16 %v148
    %v234 = vunpack.c.h.b16 %v148
    %v235 = vunpack.c.l.b16 %v149
    %v236 = vunpack.c.h.b16 %v149
    %v237 = vunpack.c.l.b16 %v150
    %v238 = vunpack.c.h.b16 %v150
    %v239 = vunpack.c.l.b16 %v151
    %v240 = vunpack.c.h.b16 %v151
    %v241 = vunpack.c.l.b16 %v152
    %v242 = vunpack.c.h.b16 %v152
    %v243 = vunpack.c.l.b16 %v153
    %v244 = vunpack.c.h.b16 %v153
    %v245 = vunpack.c.l.b16 %v154
    %v246 = vunpack.c.h.b16 %v154
    %v247 = vunpack.c.l.b16 %v155
    %v248 = vunpack.c.h.b16 %v155
    %v249 = vunpack.c.l.b16 %v156
    %v250 = vunpack.c.h.b16 %v156
    %v251 = vunpack.c.l.b16 %v157
    %v252 = vunpack.c.h.b16 %v157
    %v253 = vunpack.c.l.b16 %v158
    %v254 = vunpack.c.h.b16 %v158
    %v255 = vunpack.c.l.b16 %v159
    %v256 = vunpack.c.h.b16 %v159
    %v257 = vunpack.c.l.b16 %v160
    %v258 = vunpack.c.h.b16 %v160
    %v259 = vunpack.c.l.b16 %v161
    %v260 = vunpack.c.h.b16 %v161
    %v261 = vunpack.c.l.b16 %v162
    %v262 = vunpack.c.h.b16 %v162
    %v263 = vunpack.c.l.b16 %v163
    %v264 = vunpack.c.h.b16 %v163
    %v265 = vunpack.c.l.b16 %v164
    %v266 = vunpack.c.h.b16 %v164
    %v267 = vunpack.c.l.b16 %v165
    %v268 = vunpack.c.h.b16 %v165
    %v269 = vunpack.c.l.b16 %v166
    %v270 = vunpack.c.h.b16 %v166
    %v271 = vunpack.c.l.b16 %v167
    %v272 = vunpack.c.h.b16 %v167
    %v273 = vunpack.c.l.b16 %v168
    %v274 = vunpack.c.h.b16 %v168
    %v275 = vunpack.c.l.b16 %v169
    %v276 = vunpack.c.h.b16 %v169
    %v277 = vunpack.c.l.b16 %v170
    %v278 = vunpack.c.h.b16 %v170
    %v279 = vunpack.c.l.b16 %v171
    %v280 = vunpack.c.h.b16 %v171
    %v281 = vpack.c.b16 %v219, %v217
    %v282 = vpack.c.b16 %v220, %v218
    %v283 = vpack.c.b16 %v223, %v221
    %v284 = vpack.c.b16 %v224, %v222
    %v285 = vpack.c.b16 %v227, %v225
    %v286 = vpack.c.b16 %v228, %v226
    %v287 = vpack.c.b16 %v231, %v229
    %v288 = vpack.c.b16 %v232, %v230
    %v289 = vpack.c.b16 %v235, %v233
    %v290 = vpack.c.b16 %v236, %v234
    %v291 = vpack.c.b16 %v239, %v237
    %v292 = vpack.c.b16 %v240, %v238
    %v293 = vpack.c.b16 %v243, %v241
    %v294 = vpack.c.b16 %v244, %v242
    %v295 = vpack.c.b16 %v247, %v245
    %v296 = vpack.c.b16 %v248, %v246
    %v297 = vpack.c.b16 %v251, %v249
    %v298 = vpack.c.b16 %v252, %v250
    %v299 = vpack.c.b16 %v255, %v253
    %v300 = vpack.c.b16 %v256, %v254
    %v301 = vpack.c.b16 %v259, %v257
    %v302 = vpack.c.b16 %v260, %v258
    %v303 = vpack.c.b16 %v263, %v261
    %v304 = vpack.c.b16 %v264, %v262
    %v305 = vpack.c.b16 %v267, %v265
    %v306 = vpack.c.b16 %v268, %v266
    %v307 = vpack.c.b16 %v271, %v269
    %v308 = vpack.c.b16 %v272, %v270
    %v309 = vpack.c.b16 %v275, %v273
    %v310 = vpack.c.b16 %v276, %v274
    %v311 = vpack.c.b16 %v279, %v277
    %v312 = vpack.c.b16 %v280, %v278
    %345 = vmatpush.bf16.msra.mxu0 %v295
    %346 = vmatpush.bf16.msra.mxu0 %v293
    %347 = vmatpush.bf16.msra.mxu0 %v291
    %348 = vmatpush.bf16.msra.mxu0 %v289
    %349 = vmatpush.bf16.msra.mxu0 %v287
    %350 = vmatpush.bf16.msra.mxu0 %v285
    %351 = vmatpush.bf16.msra.mxu0 %v283
    %352 = vmatpush.bf16.msra.mxu0 %v281
    %353 = vmatmul.bf16.gmra.mxu0 %v181
    %v354 = vpop.f32.mrf.mxu0
    %v355 = vadd.f32 %v174, %v354
    %v356 = vpop.f32.mrf.mxu0
    %357 = vdwg.mxu0
    %358 = vmatpush.bf16.msra.mxu0 %v311
    %359 = vmatpush.bf16.msra.mxu0 %v309
    %360 = vmatpush.bf16.msra.mxu0 %v307
    %361 = vmatpush.bf16.msra.mxu0 %v305
    %362 = vmatpush.bf16.msra.mxu0 %v303
    %363 = vmatpush.bf16.msra.mxu0 %v301
    %364 = vmatpush.bf16.msra.mxu0 %v299
    %365 = vmatpush.bf16.msra.mxu0 %v297
    %366 = vmatmul.bf16.gmra.mxu0 %v182
    %v367 = vpop.f32.mrf.mxu0
    %v368 = vadd.f32 %v355, %v367
    %v369 = vpop.f32.mrf.mxu0
    %370 = vdwg.mxu0
    %371 = vmatpush.bf16.msra.mxu0 %v296
    %372 = vmatpush.bf16.msra.mxu0 %v294
    %373 = vmatpush.bf16.msra.mxu0 %v292
    %374 = vmatpush.bf16.msra.mxu0 %v290
    %375 = vmatpush.bf16.msra.mxu0 %v288
    %376 = vmatpush.bf16.msra.mxu0 %v286
    %377 = vmatpush.bf16.msra.mxu0 %v284
    %378 = vmatpush.bf16.msra.mxu0 %v282
    %379 = vmatmul.bf16.gmra.mxu0 %v181
    %v380 = vpop.f32.mrf.mxu0
    %v381 = vadd.f32 %v175, %v380
    %v382 = vpop.f32.mrf.mxu0
    %383 = vdwg.mxu0
    %384 = vmatpush.bf16.msra.mxu0 %v312
    %385 = vmatpush.bf16.msra.mxu0 %v310
    %386 = vmatpush.bf16.msra.mxu0 %v308
    %387 = vmatpush.bf16.msra.mxu0 %v306
    %388 = vmatpush.bf16.msra.mxu0 %v304
    %389 = vmatpush.bf16.msra.mxu0 %v302
    %390 = vmatpush.bf16.msra.mxu0 %v300
    %391 = vmatpush.bf16.msra.mxu0 %v298
    %392 = vmatmul.bf16.gmra.mxu0 %v182
    %v393 = vpop.f32.mrf.mxu0
    %v394 = vadd.f32 %v381, %v393
    %v395 = vpop.f32.mrf.mxu0
    %396 = vdwg.mxu0
    %v397 = vmax.f32 %v368, 0.0
    %v398 = vmax.f32 %v394, 0.0
    %v399 = vpack.c.bf16 %v398, %v397
    %400 = vst [vmem:[#allocation3] sm:$0xff] %v399
    %v401 = vld [vmem:[#allocation3] sm:$0xff]
    %v402 = vld [vmem:[#allocation8] sm:$0xf]
    %v403 = vld [vmem:[#allocation8 + $0x4] sm:$0xf]
    %v404 = vld [vmem:[#allocation8 + $0x8] sm:$0xf]
    %v405 = vld [vmem:[#allocation8 + $0xc] sm:$0xf]
    %v406 = vld [vmem:[#allocation8 + $0x10] sm:$0xf]
    %v407 = vld [vmem:[#allocation8 + $0x14] sm:$0xf]
    %v408 = vld [vmem:[#allocation8 + $0x18] sm:$0xf]
    %v409 = vld [vmem:[#allocation8 + $0x1c] sm:$0xf]
    %v410 = vld [vmem:[#allocation8 + $0x20] sm:$0xf]
    %v411 = vld [vmem:[#allocation8 + $0x24] sm:$0xf]
    %v412 = vld [vmem:[#allocation8 + $0x28] sm:$0xf]
    %v413 = vld [vmem:[#allocation8 + $0x2c] sm:$0xf]
    %v414 = vld [vmem:[#allocation8 + $0x30] sm:$0xf]
    %v415 = vld [vmem:[#allocation8 + $0x34] sm:$0xf]
    %v416 = vld [vmem:[#allocation8 + $0x38] sm:$0xf]
    %v417 = vld [vmem:[#allocation8 + $0x3c] sm:$0xf]
    %v418 = vld [vmem:[#allocation8 + $0x40] sm:$0xf]
    %v419 = vld [vmem:[#allocation8 + $0x44] sm:$0xf]
    %v420 = vld [vmem:[#allocation8 + $0x48] sm:$0xf]
    %v421 = vld [vmem:[#allocation8 + $0x4c] sm:$0xf]
    %v422 = vld [vmem:[#allocation8 + $0x50] sm:$0xf]
    %v423 = vld [vmem:[#allocation8 + $0x54] sm:$0xf]
    %v424 = vld [vmem:[#allocation8 + $0x58] sm:$0xf]
    %v425 = vld [vmem:[#allocation8 + $0x5c] sm:$0xf]
    %v426 = vld [vmem:[#allocation8 + $0x60] sm:$0xf]
    %v427 = vld [vmem:[#allocation8 + $0x64] sm:$0xf]
    %v428 = vld [vmem:[#allocation8 + $0x68] sm:$0xf]
    %v429 = vld [vmem:[#allocation8 + $0x6c] sm:$0xf]
    %v430 = vld [vmem:[#allocation8 + $0x70] sm:$0xf]
    %v431 = vld [vmem:[#allocation8 + $0x74] sm:$0xf]
    %v432 = vld [vmem:[#allocation8 + $0x78] sm:$0xf]
    %v433 = vld [vmem:[#allocation8 + $0x7c] sm:$0xf]
    %v434 = vld [vmem:[%s6] sm:$0x1]
    %v436 = vperm.slane %v434, 0
    %v439 = vunpack.c.l.b16 %v401
    %v440 = vunpack.c.h.b16 %v401
    %v441 = vpack.c.b16 %v439, %v439
    %v442 = vpack.c.b16 %v440, %v440
    %v477 = vunpack.c.l.b16 %v402
    %v478 = vunpack.c.l.b16 %v403
    %v479 = vunpack.c.l.b16 %v404
    %v480 = vunpack.c.l.b16 %v405
    %v481 = vunpack.c.l.b16 %v406
    %v482 = vunpack.c.l.b16 %v407
    %v483 = vunpack.c.l.b16 %v408
    %v484 = vunpack.c.l.b16 %v409
    %v485 = vunpack.c.l.b16 %v410
    %v486 = vunpack.c.l.b16 %v411
    %v487 = vunpack.c.l.b16 %v412
    %v488 = vunpack.c.l.b16 %v413
    %v489 = vunpack.c.l.b16 %v414
    %v490 = vunpack.c.l.b16 %v415
    %v491 = vunpack.c.l.b16 %v416
    %v492 = vunpack.c.l.b16 %v417
    %v493 = vunpack.c.l.b16 %v418
    %v494 = vunpack.c.l.b16 %v419
    %v495 = vunpack.c.l.b16 %v420
    %v496 = vunpack.c.l.b16 %v421
    %v497 = vunpack.c.l.b16 %v422
    %v498 = vunpack.c.l.b16 %v423
    %v499 = vunpack.c.l.b16 %v424
    %v500 = vunpack.c.l.b16 %v425
    %v501 = vunpack.c.l.b16 %v426
    %v502 = vunpack.c.l.b16 %v427
    %v503 = vunpack.c.l.b16 %v428
    %v504 = vunpack.c.l.b16 %v429
    %v505 = vunpack.c.l.b16 %v430
    %v506 = vunpack.c.l.b16 %v431
    %v507 = vunpack.c.l.b16 %v432
    %v508 = vunpack.c.l.b16 %v433
    %v509 = vpack.c.b16 %v478, %v477
    %v510 = vpack.c.b16 %v480, %v479
    %v511 = vpack.c.b16 %v482, %v481
    %v512 = vpack.c.b16 %v484, %v483
    %v513 = vpack.c.b16 %v486, %v485
    %v514 = vpack.c.b16 %v488, %v487
    %v515 = vpack.c.b16 %v490, %v489
    %v516 = vpack.c.b16 %v492, %v491
    %v517 = vpack.c.b16 %v494, %v493
    %v518 = vpack.c.b16 %v496, %v495
    %v519 = vpack.c.b16 %v498, %v497
    %v520 = vpack.c.b16 %v500, %v499
    %v521 = vpack.c.b16 %v502, %v501
    %v522 = vpack.c.b16 %v504, %v503
    %v523 = vpack.c.b16 %v506, %v505
    %v524 = vpack.c.b16 %v508, %v507
    %541 = vmatpush.bf16.msra.mxu0 %v516
    %542 = vmatpush.bf16.msra.mxu0 %v515
    %543 = vmatpush.bf16.msra.mxu0 %v514
    %544 = vmatpush.bf16.msra.mxu0 %v513
    %545 = vmatpush.bf16.msra.mxu0 %v512
    %546 = vmatpush.bf16.msra.mxu0 %v511
    %547 = vmatpush.bf16.msra.mxu0 %v510
    %548 = vmatpush.bf16.msra.mxu0 %v509
    %549 = vmatmul.bf16.gmra.mxu0 %v441
    %v550 = vpop.f32.mrf.mxu0
    %v551 = vadd.f32 %v436, %v550
    %v552 = vpop.f32.mrf.mxu0
    %553 = vdwg.mxu0
    %554 = vmatpush.bf16.msra.mxu0 %v524
    %555 = vmatpush.bf16.msra.mxu0 %v523
    %556 = vmatpush.bf16.msra.mxu0 %v522
    %557 = vmatpush.bf16.msra.mxu0 %v521
    %558 = vmatpush.bf16.msra.mxu0 %v520
    %559 = vmatpush.bf16.msra.mxu0 %v519
    %560 = vmatpush.bf16.msra.mxu0 %v518
    %561 = vmatpush.bf16.msra.mxu0 %v517
    %562 = vmatmul.bf16.gmra.mxu0 %v442
    %v563 = vpop.f32.mrf.mxu0
    %v564 = vadd.f32 %v551, %v563
    %v565 = vpop.f32.mrf.mxu0
    %566 = vdwg.mxu0
    %v567 = vpack.c.bf16 %v564, %v564
    %568 = vst [vmem:[%s7] sm:$0xf] %v567
    // Predicated region
    $region42: #{dynamics_model_forward.1} parent=1 // pred_check
      _
    $region43: #{dynamics_model_forward.1} parent=1 // pred_check_branch
      %570 = sbr.rel (0) target = $region45
    $region44: #{dynamics_model_forward.1} parent=1 // pred_region
      _
    $region45: #{dynamics_model_forward.1} parent=1 // pred_fallthru
      _
    // Predicated region
    $region46: #{dynamics_model_forward.1} parent=1 // pred_check
      _
    $region47: #{dynamics_model_forward.1} parent=1 // pred_check_branch
      %572 = sbr.rel (0) target = $region49
    $region48: #{dynamics_model_forward.1} parent=1 // pred_region
      _
    $region49: #{dynamics_model_forward.1} parent=1 // pred_fallthru
      _
    %573 = vsyncpa [#allocation5], 1
    %574 = vsyncpa [#allocation7], 1

</llo_original>
